<compile_context>
chip_gen: v7x
topology: tpu7x:2x2x1
jax: 0.10.0
libtpu: 0.0.40
codegen_flags: <defaults>
</compile_context>

<pallas_src>
import functools
import math

import jax
import jax.numpy as jnp
from jax import lax
from jax.experimental import pallas as pl
from jax.experimental.pallas import tpu as pltpu


def _flash_qkv_kernel(q_ref, k_ref, v_ref, o_ref, m_sc, l_sc, acc_sc, *, scale2):
    """One (batch, head, q-tile, k-tile) step of online-softmax attention.

    q_ref: [1, C, Tq]   k_ref/v_ref: [1, C, Tk]   o_ref: [1, C, Tq]
    m_sc/l_sc: [1, Tq] f32 running max / sum,  acc_sc: [C, Tq] f32 accumulator.
    """
    ki = pl.program_id(3)
    nk = pl.num_programs(3)

    @pl.when(ki == 0)
    def _init():
        m_sc[...] = jnp.full(m_sc.shape, -jnp.inf, dtype=m_sc.dtype)
        l_sc[...] = jnp.zeros_like(l_sc)
        acc_sc[...] = jnp.zeros_like(acc_sc)

    # Fold the full 1/sqrt(ch) scale into q once (scale applied to one operand
    # only -- mathematically identical to scaling both q and k by ch**-0.25).
    q = q_ref[0] * scale2          # [C, Tq], input dtype
    k = k_ref[0]                   # [C, Tk], input dtype
    v = v_ref[0]                   # [C, Tk], input dtype

    # Transposed scores: s_t[s, t] = sum_c k[c, s] * q[c, t]  -> [Tk, Tq], f32.
    # Contracting C keeps the only "transposed" operand the small [C, Tk] tile.
    s_t = lax.dot_general(
        k, q,
        dimension_numbers=(((0,), (0,)), ((), ())),
        preferred_element_type=jnp.float32,
    )                              # [Tk, Tq] f32

    # Online softmax over the Tk axis (axis 0 of s_t); stats are [1, Tq].
    m_prev = m_sc[...]
    m_cur = jnp.max(s_t, axis=0, keepdims=True)
    m_new = jnp.maximum(m_prev, m_cur)
    alpha = jnp.exp(m_prev - m_new)              # [1, Tq]
    p = jnp.exp(s_t - m_new)                     # [Tk, Tq] f32 (unnormalized)
    l_sc[...] = alpha * l_sc[...] + jnp.sum(p, axis=0, keepdims=True)

    # PV in natural [M,K]x[K,N] MXU form: V[C,Tk] @ P[Tk,Tq] -> [C,Tq].
    # Probabilities are cast back to the input dtype (as the PyTorch reference
    # does) so bf16 inputs hit the bf16 MXU path; accumulation stays f32.
    pv = lax.dot_general(
        v, p.astype(v.dtype),
        dimension_numbers=(((1,), (0,)), ((), ())),
        preferred_element_type=jnp.float32,
    )                              # [C, Tq] f32
    acc_sc[...] = alpha * acc_sc[...] + pv
    m_sc[...] = m_new

    @pl.when(ki == nk - 1)
    def _finalize():
        # Normalize once on the [C, Tq] accumulator (not on every [Tq,Tk] tile).
        # approx=False keeps full f32 accuracy; the op is on a [1, Tq] vector so
        # it is off the critical path either way.
        inv_l = pl.reciprocal(l_sc[...], approx=False)   # [1, Tq]
        o_ref[0] = (acc_sc[...] * inv_l).astype(o_ref.dtype)


def _pick_block(length: int, preferred: int) -> int:
    """Largest 128-multiple <= preferred that divides `length`; else full length."""
    if length <= 128 or length % 128 != 0:
        return length
    blk = min(preferred, length)
    blk -= blk % 128
    while length % blk != 0:
        blk -= 128
    return blk


def qkv_attention(
    qkv: jax.Array,
    n_heads: int,
    *,
    block_q: int = 256,
    block_k: int = 512,
    vmem_limit_bytes: int = 32 * 1024 * 1024,
) -> jax.Array:
    """Pallas equivalent of QKVAttention.forward.

    qkv: [N, 3*H*C, T]  ->  returns [N, H*C, T]
    """
    bs, width, length = qkv.shape
    assert width % (3 * n_heads) == 0
    ch = width // (3 * n_heads)
    assert ch % 8 == 0, "head dim must be a multiple of 8 for the TPU kernel"
    H = n_heads
    scale2 = 1.0 / math.sqrt(ch)   # = (ch**-0.25)**2, applied to q only

    bq = _pick_block(length, block_q)
    bk = _pick_block(length, block_k)
    num_q = length // bq
    num_k = length // bk

    kernel = functools.partial(_flash_qkv_kernel, scale2=scale2)

    # All three inputs are views into the same qkv array: the index_maps offset
    # into the q / k / v channel ranges, so no split/reshape copies in HBM.
    q_spec = pl.BlockSpec((1, ch, bq), lambda n, h, qi, ki: (n, h, qi))
    k_spec = pl.BlockSpec((1, ch, bk), lambda n, h, qi, ki: (n, H + h, ki))
    v_spec = pl.BlockSpec((1, ch, bk), lambda n, h, qi, ki: (n, 2 * H + h, ki))
    o_spec = pl.BlockSpec((1, ch, bq), lambda n, h, qi, ki: (n, h, qi))

    out = pl.pallas_call(
        kernel,
        out_shape=jax.ShapeDtypeStruct((bs, H * ch, length), qkv.dtype),
        grid_spec=pltpu.PrefetchScalarGridSpec(
            num_scalar_prefetch=0,
            grid=(bs, H, num_q, num_k),
            in_specs=[q_spec, k_spec, v_spec],
            out_specs=o_spec,
            scratch_shapes=[
                pltpu.VMEM((1, bq), jnp.float32),    # running max
                pltpu.VMEM((1, bq), jnp.float32),    # running sum
                pltpu.VMEM((ch, bq), jnp.float32),   # output accumulator
            ],
        ),
        compiler_params=pltpu.CompilerParams(
            dimension_semantics=("parallel", "parallel", "parallel", "arbitrary"),
            vmem_limit_bytes=vmem_limit_bytes,
        ),
    )(qkv, qkv, qkv)
    return out


def _qkv_attention_ref(qkv: jax.Array, n_heads: int) -> jax.Array:
    """Plain-JAX reference mirroring the PyTorch forward exactly."""
    bs, width, length = qkv.shape
    ch = width // (3 * n_heads)
    q, k, v = jnp.split(qkv, 3, axis=1)
    scale = 1.0 / math.sqrt(math.sqrt(ch))
    q = (q * scale).reshape(bs * n_heads, ch, length)
    k = (k * scale).reshape(bs * n_heads, ch, length)
    v = v.reshape(bs * n_heads, ch, length)
    weight = jnp.einsum("bct,bcs->bts", q, k, precision=lax.Precision.HIGHEST)
    weight = jax.nn.softmax(weight.astype(jnp.float32), axis=-1).astype(weight.dtype)
    a = jnp.einsum("bts,bcs->bct", weight, v, precision=lax.Precision.HIGHEST)
    return a.reshape(bs, -1, length)


if __name__ == "__main__":
    key = jax.random.PRNGKey(0)

    # (N, H, C, T, block_q, block_k):
    #  1) tiny shape -> single full-length tile per head (small-T fallback path)
    #  2) 128-aligned shape with forced small tiles -> exercises the flash
    #     tiling / online-softmax accumulation across multiple q and k tiles.
    configs = [
        (2, 2, 32, 16, 256, 512),
        (1, 2, 64, 256, 128, 128),
    ]

    for idx, (N, H, C, T, bq, bk) in enumerate(configs):
        key, sub = jax.random.split(key)
        qkv = jax.random.normal(sub, (N, 3 * H * C, T), dtype=jnp.float32)

        out = qkv_attention(qkv, n_heads=H, block_q=bq, block_k=bk)
        out = jax.block_until_ready(out)

        ref = _qkv_attention_ref(qkv, n_heads=H)
        assert out.shape == (N, H * C, T), (idx, out.shape)
        assert jnp.allclose(out, ref, atol=1e-4, rtol=1e-4), (
            idx,
            float(jnp.max(jnp.abs(out - ref))),
        )

    print("KERNEL_OK")
</pallas_src>

<mosaic_0001>
module attributes {stable_mosaic.version = 11 : i64} {
  func.func @_flash_qkv_kernel(%arg0: i32, %arg1: i32, %arg2: i32, %arg3: i32, %arg4: memref<1x32x16xf32, #tpu.memory_space<vmem>>, %arg5: memref<1x32x16xf32, #tpu.memory_space<vmem>>, %arg6: memref<1x32x16xf32, #tpu.memory_space<vmem>>, %arg7: memref<1x32x16xf32, #tpu.memory_space<vmem>>, %arg8: memref<1x16xf32, #tpu.memory_space<vmem>>, %arg9: memref<1x16xf32, #tpu.memory_space<vmem>>, %arg10: memref<32x16xf32, #tpu.memory_space<vmem>>) attributes {dimension_semantics = [#tpu.dimension_semantics<parallel>, #tpu.dimension_semantics<parallel>, #tpu.dimension_semantics<parallel>, #tpu.dimension_semantics<arbitrary>], iteration_bounds = array<i64: 2, 2, 1, 1>, scalar_prefetch = 0 : i64, scratch_operands = 3 : i64, tpu.core_type = #tpu.core_type<tc>, window_params = [{transform_indices = @transform_0, window_bounds = array<i64: 1, 32, 16>}, {transform_indices = @transform_1, window_bounds = array<i64: 1, 32, 16>}, {transform_indices = @transform_2, window_bounds = array<i64: 1, 32, 16>}, {transform_indices = @transform_3, window_bounds = array<i64: 1, 32, 16>}]} {
    %c0_i32 = arith.constant 0 : i32
    %0 = arith.cmpi eq, %arg3, %c0_i32 : i32
    %1 = arith.extui %0 : i1 to i32
    %c0_i32_0 = arith.constant 0 : i32
    %2 = arith.cmpi ne, %1, %c0_i32_0 : i32
    scf.if %2 {
      %cst_27 = arith.constant 0xFF800000 : f32
      %37 = vector.broadcast %cst_27 : f32 to vector<1x16xf32>
      %c0_28 = arith.constant 0 : index
      %c0_29 = arith.constant 0 : index
      %38 = vector.load %arg8[%c0_28, %c0_29] : memref<1x16xf32, #tpu.memory_space<vmem>>, vector<1x16xf32>
      tpu.vector_store %arg8[%c0_28, %c0_29], %37 {strides = array<i32>} : memref<1x16xf32, #tpu.memory_space<vmem>>, vector<1x16xf32>,
      %cst_30 = arith.constant 0.000000e+00 : f32
      %39 = vector.broadcast %cst_30 : f32 to vector<1x16xf32>
      %c0_31 = arith.constant 0 : index
      %c0_32 = arith.constant 0 : index
      %40 = vector.load %arg9[%c0_31, %c0_32] : memref<1x16xf32, #tpu.memory_space<vmem>>, vector<1x16xf32>
      tpu.vector_store %arg9[%c0_31, %c0_32], %39 {strides = array<i32>} : memref<1x16xf32, #tpu.memory_space<vmem>>, vector<1x16xf32>,
      %cst_33 = arith.constant 0.000000e+00 : f32
      %41 = vector.broadcast %cst_33 : f32 to vector<32x16xf32>
      %c0_34 = arith.constant 0 : index
      %c0_35 = arith.constant 0 : index
      %42 = vector.load %arg10[%c0_34, %c0_35] : memref<32x16xf32, #tpu.memory_space<vmem>>, vector<32x16xf32>
      tpu.vector_store %arg10[%c0_34, %c0_35], %41 {strides = array<i32>} : memref<32x16xf32, #tpu.memory_space<vmem>>, vector<32x16xf32>,
    } else {
    }
    %c0 = arith.constant 0 : index
    %c0_1 = arith.constant 0 : index
    %c0_2 = arith.constant 0 : index
    %3 = vector.load %arg4[%c0, %c0_1, %c0_2] : memref<1x32x16xf32, #tpu.memory_space<vmem>>, vector<1x32x16xf32>
    %4 = vector.shape_cast %3 : vector<1x32x16xf32> to vector<32x16xf32>
    %cst = arith.constant 0.176776692 : f32
    %5 = vector.broadcast %cst : f32 to vector<32x16xf32>
    %6 = arith.mulf %4, %5 : vector<32x16xf32>
    %c0_3 = arith.constant 0 : index
    %c0_4 = arith.constant 0 : index
    %c0_5 = arith.constant 0 : index
    %7 = vector.load %arg5[%c0_3, %c0_4, %c0_5] : memref<1x32x16xf32, #tpu.memory_space<vmem>>, vector<1x32x16xf32>
    %8 = vector.shape_cast %7 : vector<1x32x16xf32> to vector<32x16xf32>
    %c0_6 = arith.constant 0 : index
    %c0_7 = arith.constant 0 : index
    %c0_8 = arith.constant 0 : index
    %9 = vector.load %arg6[%c0_6, %c0_7, %c0_8] : memref<1x32x16xf32, #tpu.memory_space<vmem>>, vector<1x32x16xf32>
    %10 = vector.shape_cast %9 : vector<1x32x16xf32> to vector<32x16xf32>
    %cst_9 = arith.constant dense<0.000000e+00> : vector<16x16xf32>
    %11 = tpu.matmul %8, %6, %cst_9 {dimension_numbers = #tpu.dot_dimension_numbers<[0], [0], [1], [1], [0, 1, 1, 1], [], []>} : vector<32x16xf32>, vector<32x16xf32>, vector<16x16xf32> -> vector<16x16xf32>
    %c0_10 = arith.constant 0 : index
    %c0_11 = arith.constant 0 : index
    %12 = vector.load %arg8[%c0_10, %c0_11] : memref<1x16xf32, #tpu.memory_space<vmem>>, vector<1x16xf32>
    %cst_12 = arith.constant dense<0xFF800000> : vector<16xf32>
    %13 = vector.multi_reduction <maximumf>, %11, %cst_12 [0] : vector<16x16xf32> to vector<16xf32>
    %14 = vector.shape_cast %13 : vector<16xf32> to vector<1x16xf32>
    %15 = arith.maximumf %12, %14 : vector<1x16xf32>
    %16 = arith.subf %12, %15 : vector<1x16xf32>
    %17 = math.exp %16 : vector<1x16xf32>
    %18 = vector.broadcast %15 : vector<1x16xf32> to vector<16x16xf32>
    %19 = arith.subf %11, %18 : vector<16x16xf32>
    %20 = math.exp %19 : vector<16x16xf32>
    %c0_13 = arith.constant 0 : index
    %c0_14 = arith.constant 0 : index
    %21 = vector.load %arg9[%c0_13, %c0_14] : memref<1x16xf32, #tpu.memory_space<vmem>>, vector<1x16xf32>
    %22 = arith.mulf %17, %21 : vector<1x16xf32>
    %cst_15 = arith.constant dense<0.000000e+00> : vector<16xf32>
    %23 = vector.multi_reduction <add>, %20, %cst_15 [0] : vector<16x16xf32> to vector<16xf32>
    %24 = vector.shape_cast %23 : vector<16xf32> to vector<1x16xf32>
    %25 = arith.addf %22, %24 : vector<1x16xf32>
    %c0_16 = arith.constant 0 : index
    %c0_17 = arith.constant 0 : index
    %26 = vector.load %arg9[%c0_16, %c0_17] : memref<1x16xf32, #tpu.memory_space<vmem>>, vector<1x16xf32>
    tpu.vector_store %arg9[%c0_16, %c0_17], %25 {strides = array<i32>} : memref<1x16xf32, #tpu.memory_space<vmem>>, vector<1x16xf32>,
    %cst_18 = arith.constant dense<0.000000e+00> : vector<32x16xf32>
    %27 = tpu.matmul %10, %20, %cst_18 {dimension_numbers = #tpu.dot_dimension_numbers<[1], [0], [0], [1], [0, 0, 1, 1], [], []>} : vector<32x16xf32>, vector<16x16xf32>, vector<32x16xf32> -> vector<32x16xf32>
    %c0_19 = arith.constant 0 : index
    %c0_20 = arith.constant 0 : index
    %28 = vector.load %arg10[%c0_19, %c0_20] : memref<32x16xf32, #tpu.memory_space<vmem>>, vector<32x16xf32>
    %29 = vector.broadcast %17 : vector<1x16xf32> to vector<32x16xf32>
    %30 = arith.mulf %29, %28 : vector<32x16xf32>
    %31 = arith.addf %30, %27 : vector<32x16xf32>
    %c0_21 = arith.constant 0 : index
    %c0_22 = arith.constant 0 : index
    %32 = vector.load %arg10[%c0_21, %c0_22] : memref<32x16xf32, #tpu.memory_space<vmem>>, vector<32x16xf32>
    tpu.vector_store %arg10[%c0_21, %c0_22], %31 {strides = array<i32>} : memref<32x16xf32, #tpu.memory_space<vmem>>, vector<32x16xf32>,
    %c0_23 = arith.constant 0 : index
    %c0_24 = arith.constant 0 : index
    %33 = vector.load %arg8[%c0_23, %c0_24] : memref<1x16xf32, #tpu.memory_space<vmem>>, vector<1x16xf32>
    tpu.vector_store %arg8[%c0_23, %c0_24], %15 {strides = array<i32>} : memref<1x16xf32, #tpu.memory_space<vmem>>, vector<1x16xf32>,
    %c0_i32_25 = arith.constant 0 : i32
    %34 = arith.cmpi eq, %arg3, %c0_i32_25 : i32
    %35 = arith.extui %34 : i1 to i32
    %c0_i32_26 = arith.constant 0 : i32
    %36 = arith.cmpi ne, %35, %c0_i32_26 : i32
    scf.if %36 {
      %c0_27 = arith.constant 0 : index
      %c0_28 = arith.constant 0 : index
      %37 = vector.load %arg9[%c0_27, %c0_28] : memref<1x16xf32, #tpu.memory_space<vmem>>, vector<1x16xf32>
      %38 = tpu.reciprocal %37 : vector<1x16xf32> -> vector<1x16xf32>
      %c0_29 = arith.constant 0 : index
      %c0_30 = arith.constant 0 : index
      %39 = vector.load %arg10[%c0_29, %c0_30] : memref<32x16xf32, #tpu.memory_space<vmem>>, vector<32x16xf32>
      %40 = vector.broadcast %38 : vector<1x16xf32> to vector<32x16xf32>
      %41 = arith.mulf %39, %40 : vector<32x16xf32>
      %c0_31 = arith.constant 0 : index
      %c0_32 = arith.constant 0 : index
      %c0_33 = arith.constant 0 : index
      %42 = vector.load %arg7[%c0_31, %c0_32, %c0_33] : memref<1x32x16xf32, #tpu.memory_space<vmem>>, vector<1x32x16xf32>
      %43 = vector.shape_cast %42 : vector<1x32x16xf32> to vector<32x16xf32>
      %44 = vector.shape_cast %41 : vector<32x16xf32> to vector<1x32x16xf32>
      tpu.vector_store %arg7[%c0_31, %c0_32, %c0_33], %44 {strides = array<i32>} : memref<1x32x16xf32, #tpu.memory_space<vmem>>, vector<1x32x16xf32>,
    } else {
    }
    return
  }
  func.func @transform_0(%arg0: i32, %arg1: i32, %arg2: i32, %arg3: i32) -> (i32, i32, i32) {
    %c0_i32 = arith.constant 0 : i32
    return %arg0, %arg1, %arg2 : i32, i32, i32
  }
  func.func @transform_1(%arg0: i32, %arg1: i32, %arg2: i32, %arg3: i32) -> (i32, i32, i32) {
    %c2_i32 = arith.constant 2 : i32
    %0 = arith.addi %c2_i32, %arg1 : i32
    %c0_i32 = arith.constant 0 : i32
    return %arg0, %0, %arg3 : i32, i32, i32
  }
  func.func @transform_2(%arg0: i32, %arg1: i32, %arg2: i32, %arg3: i32) -> (i32, i32, i32) {
    %c4_i32 = arith.constant 4 : i32
    %0 = arith.addi %c4_i32, %arg1 : i32
    %c0_i32 = arith.constant 0 : i32
    return %arg0, %0, %arg3 : i32, i32, i32
  }
  func.func @transform_3(%arg0: i32, %arg1: i32, %arg2: i32, %arg3: i32) -> (i32, i32, i32) {
    %c0_i32 = arith.constant 0 : i32
    return %arg0, %arg1, %arg2 : i32, i32, i32
  }
}

</mosaic_0001>

<llo_original>
// kernel: tpu_custom_call.1
$region0: #{tpu_custom_call.1}
  #allocation0 [shape = 'u32[]', space=smem, size = 0x4, offset = 0x4, fixed_abs, tag = 'smem constant byte address 0x4 - core index']
  #allocation1 [shape = 'u32[144,128]{1,0:T(1,128)}', space=vmem, size = 0x12000, scoped, tag = 'internal scratch']
  #allocation2 [shape = 'f32[1,16]{1,0:T(1,128)}', space=vmem, size = 0x200, scoped, tag = 'scratch operand']
  #allocation3 [shape = 'f32[1,16]{1,0:T(1,128)}', space=vmem, size = 0x200, scoped, tag = 'scratch operand']
  #allocation4 [shape = 'f32[32,16]{1,0:T(8,128)}', space=vmem, size = 0x4000, scoped, tag = 'scratch operand']
  %s0 = inlined_call_operand.vmem [shape: f32[2,192,16], index: 0, kind: input, shape index: {}]
  %s1 = inlined_call_operand.vmem [shape: f32[2,192,16], index: 1, kind: input, shape index: {}]
  %s2 = inlined_call_operand.vmem [shape: f32[2,192,16], index: 2, kind: input, shape index: {}]
  %s3 = inlined_call_operand.vmem [shape: f32[2,64,16], index: 3, kind: output, shape index: {}]
  %s4 = sld [smem:[#allocation0]]
  $region53: #{tpu_custom_call.1} parent=0
    _
  %s6 = ssub.s32 1, %s4
  %s7 = scalar_select 0, %s6, %s4
  loop: start=0, step=1, limit=6
  $region2: #{tpu_custom_call.1} parent=0 // loop_pre_header
    _
  $region3: #{tpu_custom_call.1} parent=0 // loop_header
    %s9 = sphi 0, %s13
    %p10 = scmp.ge.s32.totalorder %s9, 6
    %s16 = sphi 0, %s42
    %s17 = sphi 0, %s38
    %s18 = sphi 0, %s34
    %s19 = sphi 0, %s30
    %s20 = sphi 0, %s16
    %s21 = sphi 0, %s17
    %s22 = sphi 0, %s18
    %s23 = sphi 0, %s19
    %s24 = sphi 0, %s20
    %s25 = sphi 0, %s21
    %s26 = sphi 0, %s22
    %s27 = sphi 0, %s23
    %s49 = sphi 0, %s51
    %s52 = sphi 0, %s49
    %s53 = sphi 0, %s52
    %s69 = sphi 0, %s53
    %s81 = sphi 0, %s83
    %s84 = sphi 0, %s81
    %s85 = sphi 0, %s84
    %s101 = sphi 0, %s85
    %s113 = sphi 0, %s115
    %s116 = sphi 0, %s113
    %s117 = sphi 0, %s116
    %s133 = sphi 0, %s117
    %s143 = sphi 0, %s145
    %s146 = sphi 0, %s143
    %s147 = sphi 0, %s146
    %s163 = sphi 0, %s147
  $region4: #{tpu_custom_call.1} parent=0 // loop_header_branch
    %12 = sbr.rel (%p10) target = $region8
  $region5: #{tpu_custom_call.1} parent=0 // loop_body
    %s14 = ssub.s32 %s9, 1
    %s15 = ssub.s32 %s9, 2
    %s28 = sadd.s32 1, %s19
    %p29 = scmp.ge.s32.totalorder %s28, 1
    %s30 = scalar_select %p29, 0, %s28
    %s31 = sadd.s32 1, %s18
    %s32 = scalar_select %p29, %s31, %s18
    %p33 = scmp.ge.s32.totalorder %s32, 1
    %s34 = scalar_select %p33, 0, %s32
    %s35 = sadd.s32 1, %s17
    %s36 = scalar_select %p33, %s35, %s17
    %p37 = scmp.ge.s32.totalorder %s36, 2
    %s38 = scalar_select %p37, 0, %s36
    %s39 = sadd.s32 1, %s16
    %s40 = scalar_select %p37, %s39, %s16
    %p41 = scmp.ge.s32.totalorder %s40, 2
    %s42 = scalar_select %p41, 0, %s40
    %s43 = ssub.s32 %s16, %s42
    %s44 = ssub.s32 %s17, %s38
    %s45 = sor.u32 %s43, %s44
    %s46 = ssub.s32 %s18, %s34
    %s47 = sor.u32 %s45, %s46
    %p48 = scmp.eq.s32.totalorder %s47, 0
    %s50 = sadd.s32 %s49, 1
    %s51 = scalar_select %p48, %s49, %s50
    %p54 = pneg %p48
    %p55 = scmp.eq.s32.totalorder %s9, 3
    %p56 = por %p54, %p55
    %p57 = scmp.ne.s32.totalorder %s49, %s52
    %p58 = scmp.eq.s32.totalorder %s9, 0
    %p59 = por %p57, %p58
    %p60 = scmp.ne.s32.totalorder %s49, %s52
    %p61 = scmp.eq.s32.totalorder %s14, 3
    %p62 = por %p60, %p61
    %p63 = scmp.ne.s32.totalorder %s52, %s53
    %p64 = scmp.eq.s32.totalorder %s14, 0
    %p65 = por %p63, %p64
    %p66 = scmp.ne.s32.totalorder %s52, %s53
    %p67 = scmp.eq.s32.totalorder %s15, 3
    %p68 = por %p66, %p67
    %p70 = scmp.ne.s32.totalorder %s53, %s69
    %p71 = scmp.eq.s32.totalorder %s15, 0
    %p72 = por %p70, %p71
    %s73 = sadd.s32 %s17, 2
    %s74 = sadd.s32 %s38, 2
    %s75 = ssub.s32 %s16, %s42
    %s76 = ssub.s32 %s73, %s74
    %s77 = sor.u32 %s75, %s76
    %s78 = ssub.s32 %s19, %s30
    %s79 = sor.u32 %s77, %s78
    %p80 = scmp.eq.s32.totalorder %s79, 0
    %s82 = sadd.s32 %s81, 1
    %s83 = scalar_select %p80, %s81, %s82
    %p86 = pneg %p80
    %p87 = scmp.eq.s32.totalorder %s9, 3
    %p88 = por %p86, %p87
    %p89 = scmp.ne.s32.totalorder %s81, %s84
    %p90 = scmp.eq.s32.totalorder %s9, 0
    %p91 = por %p89, %p90
    %p92 = scmp.ne.s32.totalorder %s81, %s84
    %p93 = scmp.eq.s32.totalorder %s14, 3
    %p94 = por %p92, %p93
    %p95 = scmp.ne.s32.totalorder %s84, %s85
    %p96 = scmp.eq.s32.totalorder %s14, 0
    %p97 = por %p95, %p96
    %p98 = scmp.ne.s32.totalorder %s84, %s85
    %p99 = scmp.eq.s32.totalorder %s15, 3
    %p100 = por %p98, %p99
    %p102 = scmp.ne.s32.totalorder %s85, %s101
    %p103 = scmp.eq.s32.totalorder %s15, 0
    %p104 = por %p102, %p103
    %s105 = sadd.s32 %s17, 4
    %s106 = sadd.s32 %s38, 4
    %s107 = ssub.s32 %s16, %s42
    %s108 = ssub.s32 %s105, %s106
    %s109 = sor.u32 %s107, %s108
    %s110 = ssub.s32 %s19, %s30
    %s111 = sor.u32 %s109, %s110
    %p112 = scmp.eq.s32.totalorder %s111, 0
    %s114 = sadd.s32 %s113, 1
    %s115 = scalar_select %p112, %s113, %s114
    %p118 = pneg %p112
    %p119 = scmp.eq.s32.totalorder %s9, 3
    %p120 = por %p118, %p119
    %p121 = scmp.ne.s32.totalorder %s113, %s116
    %p122 = scmp.eq.s32.totalorder %s9, 0
    %p123 = por %p121, %p122
    %p124 = scmp.ne.s32.totalorder %s113, %s116
    %p125 = scmp.eq.s32.totalorder %s14, 3
    %p126 = por %p124, %p125
    %p127 = scmp.ne.s32.totalorder %s116, %s117
    %p128 = scmp.eq.s32.totalorder %s14, 0
    %p129 = por %p127, %p128
    %p130 = scmp.ne.s32.totalorder %s116, %s117
    %p131 = scmp.eq.s32.totalorder %s15, 3
    %p132 = por %p130, %p131
    %p134 = scmp.ne.s32.totalorder %s117, %s133
    %p135 = scmp.eq.s32.totalorder %s15, 0
    %p136 = por %p134, %p135
    %s137 = ssub.s32 %s16, %s42
    %s138 = ssub.s32 %s17, %s38
    %s139 = sor.u32 %s137, %s138
    %s140 = ssub.s32 %s18, %s34
    %s141 = sor.u32 %s139, %s140
    %p142 = scmp.eq.s32.totalorder %s141, 0
    %s144 = sadd.s32 %s143, 1
    %s145 = scalar_select %p142, %s143, %s144
    %p148 = pneg %p142
    %p149 = scmp.eq.s32.totalorder %s9, 3
    %p150 = por %p148, %p149
    %p151 = scmp.ne.s32.totalorder %s143, %s146
    %p152 = scmp.eq.s32.totalorder %s9, 0
    %p153 = por %p151, %p152
    %p154 = scmp.ne.s32.totalorder %s143, %s146
    %p155 = scmp.eq.s32.totalorder %s14, 3
    %p156 = por %p154, %p155
    %p157 = scmp.ne.s32.totalorder %s146, %s147
    %p158 = scmp.eq.s32.totalorder %s14, 0
    %p159 = por %p157, %p158
    %p160 = scmp.ne.s32.totalorder %s146, %s147
    %p161 = scmp.eq.s32.totalorder %s15, 3
    %p162 = por %p160, %p161
    %p164 = scmp.ne.s32.totalorder %s147, %s163
    %p165 = scmp.eq.s32.totalorder %s15, 0
    %p166 = por %p164, %p165
    %p167 = scmp.le.s32.totalorder 1, %s9
    %p168 = scmp.lt.s32.totalorder %s9, 5
    %p169 = pnand %p167, %p168
    %p170 = pneg %p169
    // Predicated region
    $region9: #{tpu_custom_call.1} parent=5 // pred_check
      _
    $region10: #{tpu_custom_call.1} parent=5 // pred_check_branch
      %172 = sbr.rel (%p169) target = $region12
    $region11: #{tpu_custom_call.1} parent=5 // pred_region
      %s173 = ssub.s32 %s9, 1
    $region12: #{tpu_custom_call.1} parent=5 // pred_fallthru
      _
    %p174 = scmp.lt.s32.totalorder %s9, 4
    // Predicated region
    $region13: #{tpu_custom_call.1} parent=5 // pred_check
      %p175 = pneg %p174
    $region14: #{tpu_custom_call.1} parent=5 // pred_check_branch
      %177 = sbr.rel (%p175) target = $region16
    $region15: #{tpu_custom_call.1} parent=5 // pred_region
      // Predicated region
      $region17: #{tpu_custom_call.1} parent=15 // pred_check
        %p178 = pneg %p59
      $region18: #{tpu_custom_call.1} parent=15 // pred_check_branch
        %180 = sbr.rel (%p178) target = $region20
      $region19: #{tpu_custom_call.1} parent=15 // pred_region
        %s181 = smul.u32 4, %s17
        %p182 = scmp.lt.s32.totalorder %s16, 1
        %s183 = scalar_select %p182, %s16, 1
        %p184 = scmp.lt.s32.totalorder %s181, 23
        %s185 = scalar_select %p184, %s181, 23
        %p186 = scmp.lt.s32.totalorder %s18, 0
        %s187 = scalar_select %p186, %s18, 0
        %s188 = sadd.s32 %s187, %s185
        %s189 = smul.addr %s183, 24
        %s190 = sadd.s32 %s188, %s189
        %s191 = smul.addr %s190, 8
        %s192 = scalar_lea.vmem %s0, %s191
        %s193 = smul.u32 4, %s17
      $region20: #{tpu_custom_call.1} parent=15 // pred_fallthru
        _
      // Predicated region
      $region21: #{tpu_custom_call.1} parent=15 // pred_check
        %p194 = pneg %p91
      $region22: #{tpu_custom_call.1} parent=15 // pred_check_branch
        %196 = sbr.rel (%p194) target = $region24
      $region23: #{tpu_custom_call.1} parent=15 // pred_region
        %s197 = sadd.s32 %s17, 2
        %s198 = smul.u32 4, %s197
        %p199 = scmp.lt.s32.totalorder %s16, 1
        %s200 = scalar_select %p199, %s16, 1
        %p201 = scmp.lt.s32.totalorder %s198, 23
        %s202 = scalar_select %p201, %s198, 23
        %p203 = scmp.lt.s32.totalorder %s19, 0
        %s204 = scalar_select %p203, %s19, 0
        %s205 = sadd.s32 %s204, %s202
        %s206 = smul.addr %s200, 24
        %s207 = sadd.s32 %s205, %s206
        %s208 = smul.addr %s207, 8
        %s209 = scalar_lea.vmem %s1, %s208
        %s210 = sadd.s32 %s17, 2
        %s211 = smul.u32 4, %s210
      $region24: #{tpu_custom_call.1} parent=15 // pred_fallthru
        _
      // Predicated region
      $region25: #{tpu_custom_call.1} parent=15 // pred_check
        %p212 = pneg %p123
      $region26: #{tpu_custom_call.1} parent=15 // pred_check_branch
        %214 = sbr.rel (%p212) target = $region28
      $region27: #{tpu_custom_call.1} parent=15 // pred_region
        %s215 = sadd.s32 %s17, 4
        %s216 = smul.u32 4, %s215
        %p217 = scmp.lt.s32.totalorder %s16, 1
        %s218 = scalar_select %p217, %s16, 1
        %p219 = scmp.lt.s32.totalorder %s216, 23
        %s220 = scalar_select %p219, %s216, 23
        %p221 = scmp.lt.s32.totalorder %s19, 0
        %s222 = scalar_select %p221, %s19, 0
        %s223 = sadd.s32 %s222, %s220
        %s224 = smul.addr %s218, 24
        %s225 = sadd.s32 %s223, %s224
        %s226 = smul.addr %s225, 8
        %s227 = scalar_lea.vmem %s2, %s226
        %s228 = sadd.s32 %s17, 4
        %s229 = smul.u32 4, %s228
      $region28: #{tpu_custom_call.1} parent=15 // pred_fallthru
        _
    $region16: #{tpu_custom_call.1} parent=5 // pred_fallthru
      _
    %p230 = scmp.le.s32.totalorder 1, %s9
    %p231 = scmp.lt.s32.totalorder %s9, 5
    %p232 = pnand %p230, %p231
    %p233 = pneg %p232
    // Predicated region
    $region29: #{tpu_custom_call.1} parent=5 // pred_check
      _
    $region30: #{tpu_custom_call.1} parent=5 // pred_check_branch
      %235 = sbr.rel (%p232) target = $region32
    $region31: #{tpu_custom_call.1} parent=5 // pred_region
      %s236 = ssub.s32 %s9, 1
      %s237 = smul.u32 4, %s21
      %p238 = scmp.lt.s32.totalorder %s20, 1
      %s239 = scalar_select %p238, %s20, 1
      %p240 = scmp.lt.s32.totalorder %s237, 23
      %s241 = scalar_select %p240, %s237, 23
      %p242 = scmp.lt.s32.totalorder %s22, 0
      %s243 = scalar_select %p242, %s22, 0
      %s244 = sadd.s32 %s243, %s241
      %s245 = smul.addr %s239, 24
      %s246 = sadd.s32 %s244, %s245
      %s247 = smul.addr %s246, 8
      %s248 = scalar_lea.vmem %s0, %s247
      %p249 = pneg %p65
      %p250 = pneg %p62
      %s251 = sadd.s32 %s21, 2
      %s252 = smul.u32 4, %s251
      %p253 = scmp.lt.s32.totalorder %s20, 1
      %s254 = scalar_select %p253, %s20, 1
      %p255 = scmp.lt.s32.totalorder %s252, 23
      %s256 = scalar_select %p255, %s252, 23
      %p257 = scmp.lt.s32.totalorder %s23, 0
      %s258 = scalar_select %p257, %s23, 0
      %s259 = sadd.s32 %s258, %s256
      %s260 = smul.addr %s254, 24
      %s261 = sadd.s32 %s259, %s260
      %s262 = smul.addr %s261, 8
      %s263 = scalar_lea.vmem %s1, %s262
      %p264 = pneg %p97
      %p265 = pneg %p94
      %s266 = sadd.s32 %s21, 4
      %s267 = smul.u32 4, %s266
      %p268 = scmp.lt.s32.totalorder %s20, 1
      %s269 = scalar_select %p268, %s20, 1
      %p270 = scmp.lt.s32.totalorder %s267, 23
      %s271 = scalar_select %p270, %s267, 23
      %p272 = scmp.lt.s32.totalorder %s23, 0
      %s273 = scalar_select %p272, %s23, 0
      %s274 = sadd.s32 %s273, %s271
      %s275 = smul.addr %s269, 24
      %s276 = sadd.s32 %s274, %s275
      %s277 = smul.addr %s276, 8
      %s278 = scalar_lea.vmem %s2, %s277
      %p279 = pneg %p129
      %p280 = pneg %p126
      %p281 = pneg %p159
      %p282 = pneg %p156
      %s283 = smul.u32 4, %s21
      %p284 = scmp.lt.s32.totalorder %s20, 1
      %s285 = scalar_select %p284, %s20, 1
      %p286 = scmp.lt.s32.totalorder %s283, 7
      %s287 = scalar_select %p286, %s283, 7
      %p288 = scmp.lt.s32.totalorder %s22, 0
      %s289 = scalar_select %p288, %s22, 0
      %s290 = sadd.s32 %s289, %s287
      %s291 = smul.addr %s285, 8
      %s292 = sadd.s32 %s290, %s291
      %s293 = smul.addr %s292, 8
      %s294 = scalar_lea.vmem %s3, %s293
      %s295 = smul.u32 4, %s21
      %p296 = scmp.lt.s32.totalorder %s20, 1
      %s297 = scalar_select %p296, %s20, 1
      %p298 = scmp.lt.s32.totalorder %s295, 23
      %s299 = scalar_select %p298, %s295, 23
      %p300 = scmp.lt.s32.totalorder %s22, 0
      %s301 = scalar_select %p300, %s22, 0
      %s302 = sadd.s32 %s301, %s299
      %s303 = smul.addr %s297, 24
      %s304 = sadd.s32 %s302, %s303
      %s305 = smul.addr %s304, 8
      %s306 = scalar_lea.vmem %s0, %s305
      %s307 = smul.u32 4, %s21
      %s308 = sadd.s32 %s21, 2
      %s309 = smul.u32 4, %s308
      %p310 = scmp.lt.s32.totalorder %s20, 1
      %s311 = scalar_select %p310, %s20, 1
      %p312 = scmp.lt.s32.totalorder %s309, 23
      %s313 = scalar_select %p312, %s309, 23
      %p314 = scmp.lt.s32.totalorder %s23, 0
      %s315 = scalar_select %p314, %s23, 0
      %s316 = sadd.s32 %s315, %s313
      %s317 = smul.addr %s311, 24
      %s318 = sadd.s32 %s316, %s317
      %s319 = smul.addr %s318, 8
      %s320 = scalar_lea.vmem %s1, %s319
      %s321 = sadd.s32 %s21, 2
      %s322 = smul.u32 4, %s321
      %s323 = sadd.s32 %s21, 4
      %s324 = smul.u32 4, %s323
      %p325 = scmp.lt.s32.totalorder %s20, 1
      %s326 = scalar_select %p325, %s20, 1
      %p327 = scmp.lt.s32.totalorder %s324, 23
      %s328 = scalar_select %p327, %s324, 23
      %p329 = scmp.lt.s32.totalorder %s23, 0
      %s330 = scalar_select %p329, %s23, 0
      %s331 = sadd.s32 %s330, %s328
      %s332 = smul.addr %s326, 24
      %s333 = sadd.s32 %s331, %s332
      %s334 = smul.addr %s333, 8
      %s335 = scalar_lea.vmem %s2, %s334
      %s336 = sadd.s32 %s21, 4
      %s337 = smul.u32 4, %s336
      %s338 = smul.u32 4, %s21
      %p339 = scmp.lt.s32.totalorder %s20, 1
      %s340 = scalar_select %p339, %s20, 1
      %p341 = scmp.lt.s32.totalorder %s338, 7
      %s342 = scalar_select %p341, %s338, 7
      %p343 = scmp.lt.s32.totalorder %s22, 0
      %s344 = scalar_select %p343, %s22, 0
      %s345 = sadd.s32 %s344, %s342
      %s346 = smul.addr %s340, 8
      %s347 = sadd.s32 %s345, %s346
      %s348 = smul.addr %s347, 8
      %s349 = scalar_lea.vmem %s3, %s348
      %s350 = smul.u32 4, %s21
      %p351 = scmp.eq.s32.totalorder %s23, 0
      // Predicated region
      $region33: #{tpu_custom_call.1} parent=31 // pred_check
        %p352 = pneg %p351
      $region34: #{tpu_custom_call.1} parent=31 // pred_check_branch
        %354 = sbr.rel (%p352) target = $region36
      $region35: #{tpu_custom_call.1} parent=31 // pred_region
        %vm355 = vcmask 122880
        %356 = vst.msk [vmem:[#allocation2] sm:$0x1] %vm355, -inf
        %357 = vst.msk [vmem:[#allocation3] sm:$0x1] %vm355, 0.0
        %vm358 = vcmask 130048
        %359 = vst.msk [vmem:[#allocation4] sm:$0xff] %vm358, 0.0
        %360 = vst.msk [vmem:[#allocation4 + $0x8] sm:$0xff] %vm358, 0.0
        %361 = vst.msk [vmem:[#allocation4 + $0x10] sm:$0xff] %vm358, 0.0
        %362 = vst.msk [vmem:[#allocation4 + $0x18] sm:$0xff] %vm358, 0.0
      $region36: #{tpu_custom_call.1} parent=31 // pred_fallthru
        _
      %v363 = vld [vmem:[%s306] sm:$0xff]
      %v364 = vld [vmem:[%s306 + $0x8] sm:$0xff]
      %v365 = vld [vmem:[%s306 + $0x10] sm:$0xff]
      %v366 = vld [vmem:[%s306 + $0x18] sm:$0xff]
      %v367 = vmul.f32 %v363, 0.17677669
      %v368 = vmul.f32 %v364, 0.17677669
      %v369 = vmul.f32 %v365, 0.17677669
      %v370 = vmul.f32 %v366, 0.17677669
      %v371 = vld [vmem:[%s320] sm:$0xff]
      %v372 = vld [vmem:[%s320 + $0x8] sm:$0xff]
      %v373 = vld [vmem:[%s320 + $0x10] sm:$0xff]
      %v374 = vld [vmem:[%s320 + $0x18] sm:$0xff]
      %v375 = vld [vmem:[%s335] sm:$0xff]
      %v376 = vld [vmem:[%s335 + $0x8] sm:$0xff]
      %v377 = vld [vmem:[%s335 + $0x10] sm:$0xff]
      %v378 = vld [vmem:[%s335 + $0x18] sm:$0xff]
      %379 = vxpose.xlu0.b32.start [1/16] %v371, 128
      %380 = vxpose.xlu0.b32.cont [2/16] %v372, 128
      %381 = vxpose.xlu0.b32.cont [3/16] %v373, 128
      %382 = vxpose.xlu0.b32.cont [4/16] %v374, 128
      %383 = vxpose.xlu0.b32.cont [5/16] 0.0, 128
      %384 = vxpose.xlu0.b32.cont [6/16] 0.0, 128
      %385 = vxpose.xlu0.b32.cont [7/16] 0.0, 128
      %386 = vxpose.xlu0.b32.cont [8/16] 0.0, 128
      %387 = vxpose.xlu0.b32.cont [9/16] 0.0, 128
      %388 = vxpose.xlu0.b32.cont [10/16] 0.0, 128
      %389 = vxpose.xlu0.b32.cont [11/16] 0.0, 128
      %390 = vxpose.xlu0.b32.cont [12/16] 0.0, 128
      %391 = vxpose.xlu0.b32.cont [13/16] 0.0, 128
      %392 = vxpose.xlu0.b32.cont [14/16] 0.0, 128
      %393 = vxpose.xlu0.b32.cont [15/16] 0.0, 128
      %394 = vxpose.xlu0.b32.end [16/16] 0.0, 128
      %v395 = vpop.trf.xlu0
      %v396 = vpop.trf.xlu0
      %v397 = vpop.trf.xlu0
      %v398 = vpop.trf.xlu0
      %v399 = vpop.trf.xlu0
      %v400 = vpop.trf.xlu0
      %v401 = vpop.trf.xlu0
      %v402 = vpop.trf.xlu0
      %v403 = vpop.trf.xlu0
      %v404 = vpop.trf.xlu0
      %v405 = vpop.trf.xlu0
      %v406 = vpop.trf.xlu0
      %v407 = vpop.trf.xlu0
      %v408 = vpop.trf.xlu0
      %v409 = vpop.trf.xlu0
      %v410 = vpop.trf.xlu0
      %vm411 = vcmask 261120
      %v413 = vsel %vm411, %v395, 0
      %v416 = vsel %vm411, %v396, 0
      %418 = vmatprep.subr.mxu0 0.0
      %419 = vmatpush1.msra.mxu0 %v367
      %420 = vmatprep.subr.mxu0 0.0
      %421 = vmatpush1.msra.mxu0 %v368
      %422 = vmatprep.subr.mxu0 0.0
      %423 = vmatpush1.msra.mxu0 %v369
      %424 = vmatprep.subr.mxu0 0.0
      %425 = vmatpush1.msra.mxu0 %v370
      %426 = vmatprep.subr.mxu0 0.0
      %427 = vmatpush1.msra.mxu0 0.0
      %428 = vmatprep.subr.mxu0 0.0
      %429 = vmatpush1.msra.mxu0 0.0
      %430 = vmatprep.subr.mxu0 0.0
      %431 = vmatpush1.msra.mxu0 0.0
      %432 = vmatprep.subr.mxu0 0.0
      %433 = vmatpush1.msra.mxu0 0.0
      %434 = vmatprep.subr.mxu0 0.0
      %435 = vmatpush1.msra.mxu0 0.0
      %436 = vmatprep.subr.mxu0 0.0
      %437 = vmatpush1.msra.mxu0 0.0
      %438 = vmatprep.subr.mxu0 0.0
      %439 = vmatpush1.msra.mxu0 0.0
      %440 = vmatprep.subr.mxu0 0.0
      %441 = vmatpush1.msra.mxu0 0.0
      %442 = vmatprep.subr.mxu0 0.0
      %443 = vmatpush1.msra.mxu0 0.0
      %444 = vmatprep.subr.mxu0 0.0
      %445 = vmatpush1.msra.mxu0 0.0
      %446 = vmatprep.subr.mxu0 0.0
      %447 = vmatpush1.msra.mxu0 0.0
      %448 = vmatprep.subr.mxu0 0.0
      %449 = vmatpush1.msra.mxu0 0.0
      %450 = vmatprep.subr.mxu0 0.0
      %451 = vmatpush1.msra.mxu0 0.0
      %452 = vmatprep.subr.mxu0 0.0
      %453 = vmatpush1.msra.mxu0 0.0
      %454 = vmatprep.subr.mxu0 0.0
      %455 = vmatpush1.msra.mxu0 0.0
      %456 = vmatprep.subr.mxu0 0.0
      %457 = vmatpush1.msra.mxu0 0.0
      %458 = vmatprep.subr.mxu0 0.0
      %459 = vmatpush1.msra.mxu0 0.0
      %460 = vmatprep.subr.mxu0 0.0
      %461 = vmatpush1.msra.mxu0 0.0
      %462 = vmatprep.subr.mxu0 0.0
      %463 = vmatpush1.msra.mxu0 0.0
      %464 = vmatprep.subr.mxu0 0.0
      %465 = vmatpush1.msra.mxu0 0.0
      %466 = vmatprep.subr.mxu0 0.0
      %467 = vmatpush1.msra.mxu0 0.0
      %468 = vmatprep.subr.mxu0 0.0
      %469 = vmatpush1.msra.mxu0 0.0
      %470 = vmatprep.subr.mxu0 0.0
      %471 = vmatpush1.msra.mxu0 0.0
      %472 = vmatprep.subr.mxu0 0.0
      %473 = vmatpush1.msra.mxu0 0.0
      %474 = vmatprep.subr.mxu0 0.0
      %475 = vmatpush1.msra.mxu0 0.0
      %476 = vmatprep.subr.mxu0 0.0
      %477 = vmatpush1.msra.mxu0 0.0
      %478 = vmatprep.subr.mxu0 0.0
      %479 = vmatpush1.msra.mxu0 0.0
      %480 = vmatprep.subr.mxu0 0.0
      %481 = vmatpush1.msra.mxu0 0.0
      %482 = vmatprep.mubr.f32.mxu0 0.0
      %483 = vmatmul.mubr.f32.gmra.mrb[0].mxu0 %v413
      %v484 = vpop.f32.mrb[0].mxu0
      %v485 = vadd.f32 0.0, %v484
      %v486 = vpop.f32.mrb[0].mxu0
      %487 = vmatprep.mubr.f32.mxu0 0.0
      %488 = vmatmul.mubr.f32.gmra.mrb[0].mxu0 %v416
      %v489 = vpop.f32.mrb[0].mxu0
      %v490 = vadd.f32 0.0, %v489
      %v491 = vpop.f32.mrb[0].mxu0
      %492 = vdwg.mxu0
      %v493 = vld [vmem:[#allocation2] sm:$0x1]
      %vm494 = vcmask 130048
      %v495 = vsel %vm494, %v485, -inf
      %v496 = vsel %vm494, %v490, -inf
      %v497 = vmax.f32 %v495, %v496
      %v498 = vrot.slane %v497, 4
      %v499 = vmax.f32 %v497, %v498
      %v500 = vrot.slane %v499, 2
      %v501 = vmax.f32 %v499, %v500
      %v502 = vrot.slane %v501, 1
      %v503 = vmax.f32 %v501, %v502
      %v504 = vmax.f32 %v493, %v503
      %v505 = vsub.f32 %v493, %v504
      %v506 = vmul.f32 %v505, 1.442695
      %v507 = vpow.pop %v506
      %v509 = vlaneseq
      %v510 = vshrl.u32 %v509, 7
      %v511 = vsub.s32 0, %v510
      %v512 = vrot.slane %v504, %v511
      %v514 = vsub.f32 %v485, %v512
      %v515 = vsub.f32 %v490, %v512
      %v516 = vmul.f32 %v514, 1.442695
      %v517 = vpow.pop %v516
      %v518 = vmul.f32 %v515, 1.442695
      %v519 = vpow.pop %v518
      %v520 = vld [vmem:[#allocation3] sm:$0x1]
      %v521 = vmul.f32 %v507, %v520
      %v522 = vsel %vm494, %v517, 0.0
      %v523 = vsel %vm494, %v519, 0.0
      %v524 = vadd.f32 %v522, %v523
      %v525 = vrot.slane %v524, 4
      %v526 = vadd.f32 %v524, %v525
      %v527 = vrot.slane %v526, 2
      %v528 = vadd.f32 %v526, %v527
      %v529 = vrot.slane %v528, 1
      %v530 = vadd.f32 %v528, %v529
      %v531 = vadd.f32 %v521, %v530
      %vm532 = vcmask 122880
      %533 = vst.msk [vmem:[#allocation3] sm:$0x1] %vm532, %v531
      %v535 = vsel %vm494, %v375, 0
      %v538 = vsel %vm494, %v376, 0
      %v541 = vsel %vm494, %v377, 0
      %v544 = vsel %vm494, %v378, 0
      %546 = vmatprep.subr.mxu0 0.0
      %547 = vmatpush1.msra.mxu0 %v517
      %548 = vmatprep.subr.mxu0 0.0
      %549 = vmatpush1.msra.mxu0 %v519
      %550 = vmatprep.subr.mxu0 0.0
      %551 = vmatpush1.msra.mxu0 0.0
      %552 = vmatprep.subr.mxu0 0.0
      %553 = vmatpush1.msra.mxu0 0.0
      %554 = vmatprep.subr.mxu0 0.0
      %555 = vmatpush1.msra.mxu0 0.0
      %556 = vmatprep.subr.mxu0 0.0
      %557 = vmatpush1.msra.mxu0 0.0
      %558 = vmatprep.subr.mxu0 0.0
      %559 = vmatpush1.msra.mxu0 0.0
      %560 = vmatprep.subr.mxu0 0.0
      %561 = vmatpush1.msra.mxu0 0.0
      %562 = vmatprep.subr.mxu0 0.0
      %563 = vmatpush1.msra.mxu0 0.0
      %564 = vmatprep.subr.mxu0 0.0
      %565 = vmatpush1.msra.mxu0 0.0
      %566 = vmatprep.subr.mxu0 0.0
      %567 = vmatpush1.msra.mxu0 0.0
      %568 = vmatprep.subr.mxu0 0.0
      %569 = vmatpush1.msra.mxu0 0.0
      %570 = vmatprep.subr.mxu0 0.0
      %571 = vmatpush1.msra.mxu0 0.0
      %572 = vmatprep.subr.mxu0 0.0
      %573 = vmatpush1.msra.mxu0 0.0
      %574 = vmatprep.subr.mxu0 0.0
      %575 = vmatpush1.msra.mxu0 0.0
      %576 = vmatprep.subr.mxu0 0.0
      %577 = vmatpush1.msra.mxu0 0.0
      %578 = vmatprep.subr.mxu0 0.0
      %579 = vmatpush1.msra.mxu0 0.0
      %580 = vmatprep.subr.mxu0 0.0
      %581 = vmatpush1.msra.mxu0 0.0
      %582 = vmatprep.subr.mxu0 0.0
      %583 = vmatpush1.msra.mxu0 0.0
      %584 = vmatprep.subr.mxu0 0.0
      %585 = vmatpush1.msra.mxu0 0.0
      %586 = vmatprep.subr.mxu0 0.0
      %587 = vmatpush1.msra.mxu0 0.0
      %588 = vmatprep.subr.mxu0 0.0
      %589 = vmatpush1.msra.mxu0 0.0
      %590 = vmatprep.subr.mxu0 0.0
      %591 = vmatpush1.msra.mxu0 0.0
      %592 = vmatprep.subr.mxu0 0.0
      %593 = vmatpush1.msra.mxu0 0.0
      %594 = vmatprep.subr.mxu0 0.0
      %595 = vmatpush1.msra.mxu0 0.0
      %596 = vmatprep.subr.mxu0 0.0
      %597 = vmatpush1.msra.mxu0 0.0
      %598 = vmatprep.subr.mxu0 0.0
      %599 = vmatpush1.msra.mxu0 0.0
      %600 = vmatprep.subr.mxu0 0.0
      %601 = vmatpush1.msra.mxu0 0.0
      %602 = vmatprep.subr.mxu0 0.0
      %603 = vmatpush1.msra.mxu0 0.0
      %604 = vmatprep.subr.mxu0 0.0
      %605 = vmatpush1.msra.mxu0 0.0
      %606 = vmatprep.subr.mxu0 0.0
      %607 = vmatpush1.msra.mxu0 0.0
      %608 = vmatprep.subr.mxu0 0.0
      %609 = vmatpush1.msra.mxu0 0.0
      %610 = vmatprep.mubr.f32.mxu0 0.0
      %611 = vmatmul.mubr.f32.gmra.mrb[0].mxu0 %v535
      %v612 = vpop.f32.mrb[0].mxu0
      %v613 = vadd.f32 0.0, %v612
      %v614 = vpop.f32.mrb[0].mxu0
      %615 = vmatprep.mubr.f32.mxu0 0.0
      %616 = vmatmul.mubr.f32.gmra.mrb[0].mxu0 %v538
      %v617 = vpop.f32.mrb[0].mxu0
      %v618 = vadd.f32 0.0, %v617
      %v619 = vpop.f32.mrb[0].mxu0
      %620 = vmatprep.mubr.f32.mxu0 0.0
      %621 = vmatmul.mubr.f32.gmra.mrb[0].mxu0 %v541
      %v622 = vpop.f32.mrb[0].mxu0
      %v623 = vadd.f32 0.0, %v622
      %v624 = vpop.f32.mrb[0].mxu0
      %625 = vmatprep.mubr.f32.mxu0 0.0
      %626 = vmatmul.mubr.f32.gmra.mrb[0].mxu0 %v544
      %v627 = vpop.f32.mrb[0].mxu0
      %v628 = vadd.f32 0.0, %v627
      %v629 = vpop.f32.mrb[0].mxu0
      %630 = vdwg.mxu0
      %v631 = vld [vmem:[#allocation4] sm:$0xff]
      %v632 = vld [vmem:[#allocation4 + $0x8] sm:$0xff]
      %v633 = vld [vmem:[#allocation4 + $0x10] sm:$0xff]
      %v634 = vld [vmem:[#allocation4 + $0x18] sm:$0xff]
      %v636 = vlaneseq
      %v637 = vshrl.u32 %v636, 7
      %v638 = vsub.s32 0, %v637
      %v639 = vrot.slane %v507, %v638
      %v641 = vmul.f32 %v639, %v631
      %v642 = vmul.f32 %v639, %v632
      %v643 = vmul.f32 %v639, %v633
      %v644 = vmul.f32 %v639, %v634
      %v645 = vadd.f32 %v641, %v613
      %v646 = vadd.f32 %v642, %v618
      %v647 = vadd.f32 %v643, %v623
      %v648 = vadd.f32 %v644, %v628
      %649 = vst.msk [vmem:[#allocation4] sm:$0xff] %vm494, %v645
      %650 = vst.msk [vmem:[#allocation4 + $0x8] sm:$0xff] %vm494, %v646
      %651 = vst.msk [vmem:[#allocation4 + $0x10] sm:$0xff] %vm494, %v647
      %652 = vst.msk [vmem:[#allocation4 + $0x18] sm:$0xff] %vm494, %v648
      %653 = vst.msk [vmem:[#allocation2] sm:$0x1] %vm532, %v504
      // Predicated region
      $region37: #{tpu_custom_call.1} parent=31 // pred_check
        %p654 = pneg %p351
      $region38: #{tpu_custom_call.1} parent=31 // pred_check_branch
        %656 = sbr.rel (%p654) target = $region40
      $region39: #{tpu_custom_call.1} parent=31 // pred_region
        %v657 = vld [vmem:[#allocation3] sm:$0x1]
        %v658 = vrcp.pop %v657
        %v659 = vld [vmem:[#allocation4] sm:$0xff]
        %v660 = vld [vmem:[#allocation4 + $0x8] sm:$0xff]
        %v661 = vld [vmem:[#allocation4 + $0x10] sm:$0xff]
        %v662 = vld [vmem:[#allocation4 + $0x18] sm:$0xff]
        %v664 = vlaneseq
        %v665 = vshrl.u32 %v664, 7
        %v666 = vsub.s32 0, %v665
        %v667 = vrot.slane %v658, %v666
        %v669 = vmul.f32 %v659, %v667
        %v670 = vmul.f32 %v660, %v667
        %v671 = vmul.f32 %v661, %v667
        %v672 = vmul.f32 %v662, %v667
        %673 = vst.msk [vmem:[%s349] sm:$0xff] %vm494, %v669
        %674 = vst.msk [vmem:[%s349 + $0x8] sm:$0xff] %vm494, %v670
        %675 = vst.msk [vmem:[%s349 + $0x10] sm:$0xff] %vm494, %v671
        %676 = vst.msk [vmem:[%s349 + $0x18] sm:$0xff] %vm494, %v672
      $region40: #{tpu_custom_call.1} parent=31 // pred_fallthru
        _
      %s677 = smul.u32 4, %s21
      %p678 = scmp.lt.s32.totalorder %s20, 1
      %s679 = scalar_select %p678, %s20, 1
      %p680 = scmp.lt.s32.totalorder %s677, 7
      %s681 = scalar_select %p680, %s677, 7
      %p682 = scmp.lt.s32.totalorder %s22, 0
      %s683 = scalar_select %p682, %s22, 0
      %s684 = sadd.s32 %s683, %s681
      %s685 = smul.addr %s679, 8
      %s686 = sadd.s32 %s684, %s685
      %s687 = smul.addr %s686, 8
      %s688 = scalar_lea.vmem %s3, %s687
      // Predicated region
      $region41: #{tpu_custom_call.1} parent=31 // pred_check
        %p689 = pneg %p156
      $region42: #{tpu_custom_call.1} parent=31 // pred_check_branch
        %691 = sbr.rel (%p689) target = $region44
      $region43: #{tpu_custom_call.1} parent=31 // pred_region
        %s692 = smul.u32 4, %s21
      $region44: #{tpu_custom_call.1} parent=31 // pred_fallthru
        _
    $region32: #{tpu_custom_call.1} parent=5 // pred_fallthru
      _
    %p693 = scmp.le.s32.totalorder 2, %s9
    // Predicated region
    $region45: #{tpu_custom_call.1} parent=5 // pred_check
      %p694 = pneg %p693
    $region46: #{tpu_custom_call.1} parent=5 // pred_check_branch
      %696 = sbr.rel (%p694) target = $region48
    $region47: #{tpu_custom_call.1} parent=5 // pred_region
      %s697 = ssub.s32 %s9, 2
      // Predicated region
      $region49: #{tpu_custom_call.1} parent=47 // pred_check
        %p698 = pneg %p162
      $region50: #{tpu_custom_call.1} parent=47 // pred_check_branch
        %700 = sbr.rel (%p698) target = $region52
      $region51: #{tpu_custom_call.1} parent=47 // pred_region
        %s701 = smul.u32 4, %s25
        %p702 = scmp.lt.s32.totalorder %s24, 1
        %s703 = scalar_select %p702, %s24, 1
        %p704 = scmp.lt.s32.totalorder %s701, 7
        %s705 = scalar_select %p704, %s701, 7
        %p706 = scmp.lt.s32.totalorder %s26, 0
        %s707 = scalar_select %p706, %s26, 0
        %s708 = sadd.s32 %s707, %s705
        %s709 = smul.addr %s703, 8
        %s710 = sadd.s32 %s708, %s709
        %s711 = smul.addr %s710, 8
        %s712 = scalar_lea.vmem %s3, %s711
      $region52: #{tpu_custom_call.1} parent=47 // pred_fallthru
        _
    $region48: #{tpu_custom_call.1} parent=5 // pred_fallthru
      _
  $region6: #{tpu_custom_call.1} parent=0 // loop_footer
    %s13 = sadd.s32 1, %s9
  $region7: #{tpu_custom_call.1} parent=0 // loop_footer_branch
    %8 = sbr.rel target = $region3
  $region8: #{tpu_custom_call.1} parent=0 // loop_exit
    _

</llo_original>
